<compile_context>
chip_gen: v5e
topology: v5e:2x2
jax: 0.10.0
libtpu: 0.0.40
codegen_flags: <defaults>
</compile_context>

<pallas_src>
import functools

import jax
import jax.numpy as jnp
from jax.experimental import pallas as pl
from jax.experimental.pallas import tpu as pltpu


def _round_up(x, m):
    return ((x + m - 1) // m) * m


def _cdiv(a, b):
    return (a + b - 1) // b


# Portable VMEM budget: leaves >= 16 MiB headroom on v7x (64 MiB/TC) and is
# far below the 128 MiB of v5e/v6e.
_VMEM_BUDGET = 48 * 1024 * 1024


def _vmem_bytes(tile_n, d, h_pad, x_bytes):
    """Rough (conservative) VMEM usage estimate used for tile selection."""
    x_blocks = 2 * tile_n * d * x_bytes      # double-buffered input row tile
    x_cast = tile_n * d * 2                  # in-kernel bf16 copy of the tile
    h1_tmps = 2 * tile_n * h_pad * 4         # h1 and h1*w23 f32 temporaries
    out_col = 2 * tile_n * 128 * 4           # (tile_n,1) column block, lane-padded, dbl-buffered
    weights = 2 * d * h_pad * 2              # resident bf16 W1 (default double buffer)
    small = 4 * 8 * max(h_pad, 128) * 4      # b1 / w23 blocks (sublane padded) + slack
    return x_blocks + x_cast + h1_tmps + out_col + weights + small


def _pick_tile_n(n, d, h_pad, x_bytes, budget=_VMEM_BUDGET):
    """Large row tile, capped by the workload and the portable VMEM budget."""
    cap = _round_up(n, 8)
    if n >= 8 * 128:
        # Keep >= ~8 row tiles so v7x's two TensorCores stay load-balanced
        # (tiles >= 512 rows are already in the ~85%+ efficiency regime).
        cap = min(cap, _round_up(_cdiv(n, 8), 128))
    cap = min(cap, 2048)                     # 0.35us/step overhead is <<1% here
    tile = cap
    while tile > 128 and _vmem_bytes(tile, d, h_pad, x_bytes) > budget:
        tile = _round_up(tile // 2, 128)
    return tile


def _mil_mlp_kernel(x_ref, w1_ref, b1_ref, w23_ref, b23_ref, o_ref):
    # x_ref:   (tile_n, D)   input dtype (f32/bf16) row tile of (N, D)
    # w1_ref:  (D, Hp)       bf16, resident (constant index map)
    # b1_ref:  (1, Hp)       f32, resident
    # w23_ref: (1, Hp)       f32, resident  (= (W2 @ W3).T, zero-padded to Hp)
    # b23_ref: (1, 1)        f32 scalar in SMEM  (= b2 @ W3 + b3)
    # o_ref:   (tile_n, 1)   f32 per-row sigmoid logits

    # Cast to bf16 on the VPU right before the MXU matmul (input is read from
    # HBM in its native dtype exactly once).
    x = x_ref[...].astype(jnp.bfloat16)

    # Linear(D, H) + ReLU   (bf16 MXU inputs, f32 accumulator).
    h1 = jnp.dot(x, w1_ref[...], preferred_element_type=jnp.float32)
    h1 = jnp.maximum(h1 + b1_ref[...], 0.0)
    # Dropout(p=0.0) is identity.

    # Folded Linear(H,32) @ Linear(32,1): per-row dot with w23.  Broadcast
    # multiply (VPU) + lane reduce (XLU) — stays off the MXU entirely.
    z = jnp.sum(h1 * w23_ref[...], axis=1, keepdims=True) + b23_ref[0, 0]

    # Sigmoid: exp + approx reciprocal both land on the EUP slot.
    o_ref[...] = pl.reciprocal(1.0 + jnp.exp(-z), approx=True)


def mil_regressor_pallas(x_flat, params, *, tile_n=None):
    """x_flat: (N, D) -> (N,) sigmoid frame logits via the fused MLP kernel."""
    w1, b1, w2, b2, w3, b3 = params
    n, d = x_flat.shape
    h = w1.shape[1]

    # Fold the last two linear layers on the host (no nonlinearity between them).
    w23_row = (w2 @ w3).reshape(1, h).astype(jnp.float32)       # (1, H)
    b23 = (b2 @ w3 + b3).reshape(1, 1).astype(jnp.float32)      # (1, 1) -> SMEM

    # Zero-pad H up to a lane multiple (128) so MXU columns / VPU lanes are
    # dense (padded columns contribute exactly 0).  One-time, tiny host cost.
    h_pad = max(128, _round_up(h, 128))
    w1_c = w1.astype(jnp.bfloat16)                               # keep params bf16-able upstream
    b1_c = b1.reshape(1, h).astype(jnp.float32)
    if h_pad != h:
        w1_c = jnp.pad(w1_c, ((0, 0), (0, h_pad - h)))
        b1_c = jnp.pad(b1_c, ((0, 0), (0, h_pad - h)))
        w23_row = jnp.pad(w23_row, ((0, 0), (0, h_pad - h)))

    if tile_n is None:
        tile_n = _pick_tile_n(n, d, h_pad, x_flat.dtype.itemsize)
    else:
        tile_n = max(8, _round_up(tile_n, 8))
    tile_n = min(tile_n, _round_up(n, 8))
    num_tiles = pl.cdiv(n, tile_n)            # ragged last block handled by Pallas

    full = lambda i: (0, 0)
    # Weights/biases have constant index maps -> DMA'd once and stay resident
    # across the row grid; only the x tile / output column is pipelined.
    # (Their default double buffers are already counted in the VMEM budget.)
    out = pl.pallas_call(
        _mil_mlp_kernel,
        out_shape=jax.ShapeDtypeStruct((n, 1), jnp.float32),
        grid_spec=pltpu.PrefetchScalarGridSpec(
            num_scalar_prefetch=0,
            grid=(num_tiles,),
            in_specs=[
                pl.BlockSpec((tile_n, d), lambda i: (i, 0)),     # x row tile (native dtype)
                pl.BlockSpec((d, h_pad), full),                  # W1 (bf16, resident)
                pl.BlockSpec((1, h_pad), full),                  # b1
                pl.BlockSpec((1, h_pad), full),                  # W23 (folded)
                pl.BlockSpec(memory_space=pltpu.MemorySpace.SMEM),  # b23 scalar
            ],
            out_specs=pl.BlockSpec((tile_n, 1), lambda i: (i, 0)),
        ),
        compiler_params=pltpu.CompilerParams(
            dimension_semantics=("parallel",),       # v7x shards row tiles across 2 TCs
            vmem_limit_bytes=64 * 1024 * 1024),      # raised to match the larger tiles
    )(x_flat, w1_c, b1_c, w23_row, b23)

    return out.reshape(n)


def mil_filter(logits, seq_len):
    """Per-batch mean of top-k logits over the valid prefix, k = seq_len//16 + 1.

    logits: (B, T) float32, seq_len: (B,) int32.  Plain-JAX glue: dynamic-k
    top-k over a dynamic prefix is data-dependent; lax.top_k with the static
    upper bound k_max = T//16 + 1 followed by a dynamic-k mask/mean.
    """
    # TODO(synk): move the dynamic-k top-k into a Pallas kernel for large T.
    _, t = logits.shape
    idx = jnp.arange(t)
    valid = idx[None, :] < seq_len[:, None]
    masked = jnp.where(valid, logits, -jnp.inf)

    k_max = t // 16 + 1
    topk_vals, _ = jax.lax.top_k(masked, k_max)                  # (B, k_max)

    k = seq_len // 16 + 1
    k = jnp.minimum(k, jnp.maximum(seq_len, 1))                  # guard seq_len == 0
    sel = jnp.arange(k_max)[None, :] < k[:, None]
    topk_sum = jnp.sum(jnp.where(sel, topk_vals, 0.0), axis=1)
    return topk_sum / k.astype(logits.dtype)


def mil_forward(avf_out, seq_len, params, *, tile_n=None):
    """avf_out: (B,T,D); seq_len: (B,) int32 -> (mmil_logits (B,), frame logits (B,T))."""
    b, t, d = avf_out.shape
    x_flat = avf_out.reshape(b * t, d)
    logits = mil_regressor_pallas(x_flat, params, tile_n=tile_n)  # (B*T,)
    logits = logits.reshape(b, t)                                 # == .squeeze()
    if seq_len is None:                                           # torch filter() early-return
        return logits, logits
    mmil_logits = mil_filter(logits, seq_len)
    return mmil_logits, logits


def init_params(key, input_dim, h_dim):
    k1, k2, k3 = jax.random.split(key, 3)
    w1 = jax.random.normal(k1, (input_dim, h_dim), jnp.float32) * (1.0 / jnp.sqrt(input_dim))
    b1 = jnp.zeros((1, h_dim), jnp.float32)
    w2 = jax.random.normal(k2, (h_dim, 32), jnp.float32) * (1.0 / jnp.sqrt(h_dim))
    b2 = jnp.zeros((1, 32), jnp.float32)
    w3 = jax.random.normal(k3, (32, 1), jnp.float32) * (1.0 / jnp.sqrt(32.0))
    b3 = jnp.zeros((1, 1), jnp.float32)
    return (w1, b1, w2, b2, w3, b3)


def mil_forward_ref(avf_out, seq_len, params):
    """Pure-JAX f32 reference for the numerics check."""
    w1, b1, w2, b2, w3, b3 = params
    h = jnp.maximum(avf_out @ w1 + b1[0], 0.0)
    h = h @ w2 + b2[0]
    h = h @ w3 + b3[0]
    logits = jax.nn.sigmoid(h)[..., 0]
    return mil_filter(logits, seq_len), logits


if __name__ == "__main__":
    B, T, D, H = 2, 8, 32, 64   # small demo shapes; module default h_dim=512

    key = jax.random.PRNGKey(0)
    kx, kp = jax.random.split(key)
    avf_out = jax.random.normal(kx, (B, T, D), jnp.float32)
    seq_len = jnp.array([8, 5], dtype=jnp.int32)
    params = init_params(kp, D, H)

    fwd = jax.jit(functools.partial(mil_forward, params=params))
    mmil_logits, frame_logits = jax.block_until_ready(fwd(avf_out, seq_len))

    ref_mmil, ref_frame = mil_forward_ref(avf_out, seq_len, params)
    assert mmil_logits.shape == (B,)
    assert frame_logits.shape == (B, T)
    # bf16 MXU inputs (f32 accumulate) + approx reciprocal -> loosened tolerance
    # versus the pure-f32 reference; sigmoid outputs live in [0, 1].
    assert jnp.allclose(frame_logits, ref_frame, atol=2e-2, rtol=0.0)
    assert jnp.allclose(mmil_logits, ref_mmil, atol=2e-2, rtol=0.0)

    print("KERNEL_OK")
</pallas_src>

<mosaic_0001>
module attributes {stable_mosaic.version = 11 : i64} {
  func.func @_mil_mlp_kernel(%arg0: i32, %arg1: memref<16x32xf32, #tpu.memory_space<vmem>>, %arg2: memref<32x128xbf16, #tpu.memory_space<vmem>>, %arg3: memref<1x128xf32, #tpu.memory_space<vmem>>, %arg4: memref<1x128xf32, #tpu.memory_space<vmem>>, %arg5: memref<1x1xf32, #tpu.memory_space<smem>>, %arg6: memref<16x1xf32, #tpu.memory_space<vmem>>) attributes {dimension_semantics = [#tpu.dimension_semantics<parallel>], iteration_bounds = array<i64: 1>, scalar_prefetch = 0 : i64, scratch_operands = 0 : i64, tpu.core_type = #tpu.core_type<tc>, window_params = [{transform_indices = @transform_0, window_bounds = array<i64: 16, 32>}, {pipeline_mode = #tpu.pipeline_mode<synchronous>, transform_indices = @transform_1, window_bounds = array<i64: 32, 128>}, {pipeline_mode = #tpu.pipeline_mode<synchronous>, transform_indices = @transform_2, window_bounds = array<i64: 1, 128>}, {pipeline_mode = #tpu.pipeline_mode<synchronous>, transform_indices = @transform_3, window_bounds = array<i64: 1, 128>}, {transform_indices = @transform_4, window_bounds = array<i64: 1, 1>}, {transform_indices = @transform_5, window_bounds = array<i64: 16, 1>}]} {
    %c0 = arith.constant 0 : index
    %c0_0 = arith.constant 0 : index
    %0 = vector.load %arg1[%c0, %c0_0] : memref<16x32xf32, #tpu.memory_space<vmem>>, vector<16x32xf32>
    %1 = arith.truncf %0 : vector<16x32xf32> to vector<16x32xbf16>
    %c0_1 = arith.constant 0 : index
    %c0_2 = arith.constant 0 : index
    %2 = vector.load %arg2[%c0_1, %c0_2] : memref<32x128xbf16, #tpu.memory_space<vmem>>, vector<32x128xbf16>
    %cst = arith.constant dense<0.000000e+00> : vector<16x128xf32>
    %3 = tpu.matmul %1, %2, %cst {dimension_numbers = #tpu.dot_dimension_numbers<[1], [0], [0], [1], [0, 0, 1, 1], [], []>} : vector<16x32xbf16>, vector<32x128xbf16>, vector<16x128xf32> -> vector<16x128xf32>
    %c0_3 = arith.constant 0 : index
    %c0_4 = arith.constant 0 : index
    %4 = vector.load %arg3[%c0_3, %c0_4] : memref<1x128xf32, #tpu.memory_space<vmem>>, vector<1x128xf32>
    %5 = vector.broadcast %4 : vector<1x128xf32> to vector<16x128xf32>
    %6 = arith.addf %3, %5 : vector<16x128xf32>
    %cst_5 = arith.constant 0.000000e+00 : f32
    %7 = vector.broadcast %cst_5 : f32 to vector<16x128xf32>
    %8 = arith.maximumf %6, %7 : vector<16x128xf32>
    %c0_6 = arith.constant 0 : index
    %c0_7 = arith.constant 0 : index
    %9 = vector.load %arg4[%c0_6, %c0_7] : memref<1x128xf32, #tpu.memory_space<vmem>>, vector<1x128xf32>
    %10 = vector.broadcast %9 : vector<1x128xf32> to vector<16x128xf32>
    %11 = arith.mulf %8, %10 : vector<16x128xf32>
    %cst_8 = arith.constant dense<0.000000e+00> : vector<16xf32>
    %12 = vector.multi_reduction <add>, %11, %cst_8 [1] : vector<16x128xf32> to vector<16xf32>
    %13 = vector.shape_cast %12 : vector<16xf32> to vector<16x1xf32>
    %c0_9 = arith.constant 0 : index
    %c0_10 = arith.constant 0 : index
    %14 = memref.load %arg5[%c0_9, %c0_10] : memref<1x1xf32, #tpu.memory_space<smem>>
    %15 = vector.broadcast %14 : f32 to vector<16x1xf32>
    %16 = arith.addf %13, %15 : vector<16x1xf32>
    %cst_11 = arith.constant 0.000000e+00 : f32
    %17 = vector.broadcast %cst_11 : f32 to vector<16x1xf32>
    %18 = arith.subf %17, %16 : vector<16x1xf32>
    %19 = math.exp %18 : vector<16x1xf32>
    %cst_12 = arith.constant 1.000000e+00 : f32
    %20 = vector.broadcast %cst_12 : f32 to vector<16x1xf32>
    %21 = arith.addf %20, %19 : vector<16x1xf32>
    %22 = tpu.reciprocal %21 {approx = true} : vector<16x1xf32> -> vector<16x1xf32>
    %c0_13 = arith.constant 0 : index
    %c0_14 = arith.constant 0 : index
    %23 = vector.load %arg6[%c0_13, %c0_14] : memref<16x1xf32, #tpu.memory_space<vmem>>, vector<16x1xf32>
    tpu.vector_store %arg6[%c0_13, %c0_14], %22 {strides = array<i32>} : memref<16x1xf32, #tpu.memory_space<vmem>>, vector<16x1xf32>,
    return
  }
  func.func @transform_0(%arg0: i32) -> (i32, i32) {
    %c0_i32 = arith.constant 0 : i32
    %c0_i32_0 = arith.constant 0 : i32
    return %arg0, %c0_i32 : i32, i32
  }
  func.func @transform_1(%arg0: i32) -> (i32, i32) {
    %c0_i32 = arith.constant 0 : i32
    %c0_i32_0 = arith.constant 0 : i32
    %c0_i32_1 = arith.constant 0 : i32
    return %c0_i32, %c0_i32_0 : i32, i32
  }
  func.func @transform_2(%arg0: i32) -> (i32, i32) {
    %c0_i32 = arith.constant 0 : i32
    %c0_i32_0 = arith.constant 0 : i32
    %c0_i32_1 = arith.constant 0 : i32
    return %c0_i32, %c0_i32_0 : i32, i32
  }
  func.func @transform_3(%arg0: i32) -> (i32, i32) {
    %c0_i32 = arith.constant 0 : i32
    %c0_i32_0 = arith.constant 0 : i32
    %c0_i32_1 = arith.constant 0 : i32
    return %c0_i32, %c0_i32_0 : i32, i32
  }
  func.func @transform_4(%arg0: i32) -> (i32, i32) {
    %c0_i32 = arith.constant 0 : i32
    %c0_i32_0 = arith.constant 0 : i32
    %c0_i32_1 = arith.constant 0 : i32
    return %c0_i32, %c0_i32_0 : i32, i32
  }
  func.func @transform_5(%arg0: i32) -> (i32, i32) {
    %c0_i32 = arith.constant 0 : i32
    %c0_i32_0 = arith.constant 0 : i32
    return %arg0, %c0_i32 : i32, i32
  }
}

</mosaic_0001>

<llo_original>
// kernel: mil_forward.1
$region0: #{mil_forward.1}
  #allocation0 [shape = 'u32[]', space=smem, size = 0x4, offset = 0x4, fixed_abs, tag = 'smem constant byte address 0x4 - core index']
  #allocation1 [shape = 'u32[72,128]{1,0:T(1,128)}', space=vmem, size = 0x9000, scoped, tag = 'internal scratch']
  #allocation2 [shape = 'f32[1,1]{1,0:T(1,128)S(6)}', space=smem, size = 0x200, scoped, tag = 'scoped memory for mil_forward.1']
  %s0 = inlined_call_operand.hbm [shape: f32[16,32], index: 0, kind: input, shape index: {}]
  %s1 = inlined_call_operand.hbm [shape: bf16[32,128], index: 1, kind: input, shape index: {}]
  %s2 = inlined_call_operand.vmem [shape: f32[1,128], index: 2, kind: input, shape index: {}]
  %s3 = inlined_call_operand.vmem [shape: f32[1,128], index: 3, kind: input, shape index: {}]
  %s4 = inlined_call_operand.<no memory space> [shape: f32[1,1], index: 4, kind: input, shape index: {}]
  %s5 = inlined_call_operand.vmem [shape: f32[16,1], index: 5, kind: output, shape index: {}]
  %s6 = sld [smem:[#allocation0]]
  $region38: #{mil_forward.1} parent=0
    _
  %s8 = ssub.s32 1, %s6
  %s9 = scalar_select 0, %s8, %s6
  %10 = sst [smem:[#allocation2]] %s4
  $region1: #{mil_forward.1} parent=0
    #allocation3 [shape = 'u8[8192]{0}', space=vmem, size = 0x2000, scoped, tag = 'input window, operand 0, single buffered']
    #allocation4 [shape = 's32[1]{0}', space=sflag, size = 0x4, scoped, tag = 'scoped memory for mil_forward.1']
    #allocation5 [shape = 'u8[8192]{0}', space=vmem, size = 0x2000, scoped, tag = 'input window, operand 1, single buffered']
    #allocation6 [shape = 's32[1]{0}', space=sflag, size = 0x4, scoped, tag = 'scoped memory for mil_forward.1']
    %11 = vsyncpa [#allocation4], 0
    %12 = vsyncpa [#allocation6], 0
    // Predicated region
    $region2: #{mil_forward.1} parent=1 // pred_check
      _
    $region3: #{mil_forward.1} parent=1 // pred_check_branch
      %14 = sbr.rel (0) target = $region5
    $region4: #{mil_forward.1} parent=1 // pred_region
      %16 = vsyncadd [#allocation4], 0
      %s17 = sshll.u32 %s0, 4
      %s18 = int_to_ptr.hbm [resolvable:$true] %s17
      %s19 = sshll.u32 [#allocation3], 4
      %s20 = int_to_ptr.vmem [resolvable:$true] %s19
      %25 = dma.hbm_to_vmem [thread:$0]  %s18, 256, %s20, [#allocation4], 128, 128, 8
    $region5: #{mil_forward.1} parent=1 // pred_fallthru
      _
    // Predicated region
    $region6: #{mil_forward.1} parent=1 // pred_check
      _
    $region7: #{mil_forward.1} parent=1 // pred_check_branch
      %27 = sbr.rel (0) target = $region9
    $region8: #{mil_forward.1} parent=1 // pred_region
      %29 = vsyncadd [#allocation6], 0
      %s30 = sshll.u32 %s1, 4
      %s31 = int_to_ptr.hbm [resolvable:$true] %s30
      %s32 = sshll.u32 [#allocation5], 4
      %s33 = int_to_ptr.vmem [resolvable:$true] %s32
      %38 = dma.hbm_to_vmem [thread:$0]  %s31, 256, %s33, [#allocation6], 64, 64, 4
    $region9: #{mil_forward.1} parent=1 // pred_fallthru
      _
    // Predicated region
    $region10: #{mil_forward.1} parent=1 // pred_check
      _
    $region11: #{mil_forward.1} parent=1 // pred_check_branch
      %40 = sbr.rel (0) target = $region13
    $region12: #{mil_forward.1} parent=1 // pred_region
      _
    $region13: #{mil_forward.1} parent=1 // pred_fallthru
      _
    // Predicated region
    $region14: #{mil_forward.1} parent=1 // pred_check
      _
    $region15: #{mil_forward.1} parent=1 // pred_check_branch
      %42 = sbr.rel (0) target = $region17
    $region16: #{mil_forward.1} parent=1 // pred_region
      _
    $region17: #{mil_forward.1} parent=1 // pred_fallthru
      _
    // Predicated region
    $region18: #{mil_forward.1} parent=1 // pred_check
      _
    $region19: #{mil_forward.1} parent=1 // pred_check_branch
      %44 = sbr.rel (0) target = $region21
    $region20: #{mil_forward.1} parent=1 // pred_region
      _
    $region21: #{mil_forward.1} parent=1 // pred_fallthru
      _
    // Predicated region
    $region22: #{mil_forward.1} parent=1 // pred_check
      _
    $region23: #{mil_forward.1} parent=1 // pred_check_branch
      %46 = sbr.rel (0) target = $region25
    $region24: #{mil_forward.1} parent=1 // pred_region
      %48 = dma.done [#allocation4], 256
    $region25: #{mil_forward.1} parent=1 // pred_fallthru
      _
    // Predicated region
    $region26: #{mil_forward.1} parent=1 // pred_check
      _
    $region27: #{mil_forward.1} parent=1 // pred_check_branch
      %50 = sbr.rel (0) target = $region29
    $region28: #{mil_forward.1} parent=1 // pred_region
      %52 = dma.done [#allocation6], 256
    $region29: #{mil_forward.1} parent=1 // pred_fallthru
      _
    %v54 = vld [vmem:[#allocation3] sm:$0xff]
    %v55 = vld [vmem:[#allocation3 + $0x8] sm:$0xff]
    %v56 = vpack.c.bf16 %v55, %v54
    %v57 = vld [vmem:[#allocation5] sm:$0xf]
    %v58 = vld [vmem:[#allocation5 + $0x4] sm:$0xf]
    %v59 = vld [vmem:[#allocation5 + $0x8] sm:$0xf]
    %v60 = vld [vmem:[#allocation5 + $0xc] sm:$0xf]
    %v61 = vld [vmem:[%s2] sm:$0x1]
    %v63 = vperm.slane %v61, 0
    %v69 = vunpack.c.l.b16 %v57
    %v70 = vunpack.c.l.b16 %v58
    %v71 = vunpack.c.l.b16 %v59
    %v72 = vunpack.c.l.b16 %v60
    %v73 = vpack.c.b16 %v70, %v69
    %v74 = vpack.c.b16 %v72, %v71
    %vm77 = vcmask 261120
    %v79 = vsel %vm77, %v56, 0
    %81 = vmatpush.bf16.msra.mxu0 0
    %82 = vmatpush.bf16.msra.mxu0 0
    %83 = vmatpush.bf16.msra.mxu0 0
    %84 = vmatpush.bf16.msra.mxu0 0
    %85 = vmatpush.bf16.msra.mxu0 0
    %86 = vmatpush.bf16.msra.mxu0 0
    %87 = vmatpush.bf16.msra.mxu0 %v74
    %88 = vmatpush.bf16.msra.mxu0 %v73
    %89 = vmatmul.bf16.gmra.mxu0 %v79
    %v90 = vpop.f32.mrf.mxu0
    %v91 = vadd.f32 %v63, %v90
    %v92 = vpop.f32.mrf.mxu0
    %v93 = vadd.f32 %v63, %v92
    %94 = vdwg.mxu0
    %v95 = vmax.f32 %v91, 0.0
    %v96 = vmax.f32 %v93, 0.0
    %v97 = vld [vmem:[%s3] sm:$0x1]
    %v99 = vperm.slane %v97, 0
    %v101 = vmul.f32 %v95, %v99
    %v102 = vmul.f32 %v96, %v99
    %103 = vadd.xlane.f32.xlu0 %v101
    %v104 = vpop.xlane.xlu0 %103
    %105 = vadd.xlane.f32.xlu0 %v102
    %v106 = vpop.xlane.xlu0 %105
    %s107 = sld [smem:[#allocation2]]
    %v108 = vstv %s107
    %v109 = vadd.f32 %v104, %v108
    %v110 = vadd.f32 %v106, %v108
    %v111 = vsub.f32 0.0, %v109
    %v112 = vsub.f32 0.0, %v110
    %v113 = vmul.f32 %v111, 1.442695
    %v114 = vpow.pop %v113
    %v115 = vmul.f32 %v112, 1.442695
    %v116 = vpow.pop %v115
    %v117 = vadd.f32 %v114, 1.0
    %v118 = vadd.f32 %v116, 1.0
    %v119 = vrcp.pop %v117
    %v120 = vrcp.pop %v118
    %vm121 = vcmask 7168
    %122 = vst.msk [vmem:[%s5] sm:$0xff] %vm121, %v119
    %123 = vst.msk [vmem:[%s5 + $0x8] sm:$0xff] %vm121, %v120
    // Predicated region
    $region30: #{mil_forward.1} parent=1 // pred_check
      _
    $region31: #{mil_forward.1} parent=1 // pred_check_branch
      %125 = sbr.rel (0) target = $region33
    $region32: #{mil_forward.1} parent=1 // pred_region
      _
    $region33: #{mil_forward.1} parent=1 // pred_fallthru
      _
    // Predicated region
    $region34: #{mil_forward.1} parent=1 // pred_check
      _
    $region35: #{mil_forward.1} parent=1 // pred_check_branch
      %127 = sbr.rel (0) target = $region37
    $region36: #{mil_forward.1} parent=1 // pred_region
      _
    $region37: #{mil_forward.1} parent=1 // pred_fallthru
      _
    %128 = vsyncpa [#allocation4], 1
    %129 = vsyncpa [#allocation6], 1

</llo_original>
